<compile_context>
chip_gen: v7x
topology: tpu7x:2x2x1
jax: 0.10.0
libtpu: 0.0.40
codegen_flags: <defaults>
</compile_context>

<pallas_src>
import jax
import jax.numpy as jnp
from jax.experimental import pallas as pl
from jax.experimental.pallas import tpu as pltpu

_LANE = 128


def _round_up(x, m):
    return ((x + m - 1) // m) * m


def _sublane_multiple(dtype):
    # Minimum sublane granularity per element width (f32:8, bf16:16, int8:32).
    return {4: 8, 2: 16, 1: 32}.get(jnp.dtype(dtype).itemsize, 8)


def _vmem_capacity_bytes():
    try:
        return int(getattr(pltpu.get_tpu_info(), "vmem_capacity_bytes",
                           128 * 1024 * 1024))
    except Exception:
        return 128 * 1024 * 1024


def _default_tile_budget_bytes():
    """Generation-aware input-tile budget (fits scoped VMEM w/ double buffer)."""
    if _vmem_capacity_bytes() <= 64 * 1024 * 1024:
        # v7x-class: 64 MiB VMEM per TensorCore -> keep tiles modest.
        return 2 * 1024 * 1024
    # v5e/v6e: 128 MiB VMEM, lower HBM BW -> larger tiles amortize grid overhead.
    return 4 * 1024 * 1024


def _avg_consensus_kernel(x_ref, o_ref):
    # x_ref: (nb, T, cb) input block ; o_ref: (nb, cb) lane/sublane-dense block.
    t = x_ref.shape[1]
    # f32 accumulation without materializing a widened (nb, T, cb) f32 copy.
    s = jnp.sum(x_ref[...], axis=1, dtype=jnp.float32)
    o_ref[...] = (s * (1.0 / t)).astype(o_ref.dtype)


def _pick_tiles(n, t, c, itemsize, sub, budget):
    """Choose (nb, cb) batch/channel block sizes.

    Constraints (the (8,128) BlockSpec rule):
      * output block (nb, cb): nb multiple of `sub` or == n; cb multiple of
        128 or == c.
      * input block (nb, t, cb): trailing dims (t, cb); t == full dim.
      * nb * t * round_up(cb,128) * itemsize stays within `budget`
        (the pipeline double-buffers it).
    """
    def tile_bytes(nb, cb):
        return nb * t * _round_up(cb, _LANE) * itemsize

    nb_min = n if n <= sub else sub

    if tile_bytes(nb_min, c) > budget:
        # Very wide rows: tile the channel axis too (multiples of 128 lanes).
        cb = (budget // max(nb_min * t * itemsize, 1)) // _LANE * _LANE
        cb = max(cb, _LANE)
        if cb >= c:
            cb = c
        return nb_min, cb

    # Full C per block; tile the batch axis only.
    nb_max = budget // tile_bytes(1, c)
    if nb_max >= n:
        return n, c
    nb = max(sub, (nb_max // sub) * sub)
    # Keep >=2 grid steps when there is enough work so the 'parallel' axis can
    # be sharded across TensorCores (megacore / v7x dual-TC).
    if n >= 2 * sub:
        nb = min(nb, _round_up(pl.cdiv(n, 2), sub))
    return nb, c


def _avg_consensus(x, tile_budget_bytes=None):
    n, t, c = x.shape
    itemsize = jnp.dtype(x.dtype).itemsize
    sub = _sublane_multiple(x.dtype)
    budget = tile_budget_bytes or _default_tile_budget_bytes()
    nb, cb = _pick_tiles(n, t, c, itemsize, sub, budget)

    grid = (pl.cdiv(n, nb), pl.cdiv(c, cb))

    cost = pl.CostEstimate(
        flops=n * t * c,
        transcendentals=0,
        bytes_accessed=n * t * c * itemsize + n * c * itemsize,
    )

    # Double-buffered input tile + output tile (lane-padded in VMEM).
    cb_vmem = _round_up(cb, _LANE)
    need = (2 * nb * t * cb_vmem + 2 * _round_up(nb, sub) * cb_vmem) * itemsize
    params = {"dimension_semantics": ("parallel", "parallel")}
    if need > 24 * 1024 * 1024:
        params["vmem_limit_bytes"] = int(
            min(need * 1.5, 0.8 * _vmem_capacity_bytes()))

    out2d = pl.pallas_call(
        _avg_consensus_kernel,
        out_shape=jax.ShapeDtypeStruct((n, c), x.dtype),
        grid=grid,
        in_specs=[pl.BlockSpec((nb, t, cb), lambda i, j: (i, 0, j))],
        out_specs=pl.BlockSpec((nb, cb), lambda i, j: (i, j)),
        compiler_params=pltpu.CompilerParams(**params),
        cost_estimate=cost,
    )(x)

    # Free layout plumbing: restore the keepdim (N, 1, C) shape.
    return out2d.reshape(n, 1, c)


def consensus_module(x, consensus_type="avg", dim=1):
    """JAX/Pallas equivalent of ConsensusModule.forward.

    x: (N, T, C) array; dim=1 (segment axis), matching the TSN default.
    """
    if consensus_type == "rnn":
        consensus_type = "identity"

    if consensus_type == "identity":
        # Pure passthrough: no kernel, no HBM round-trip; lets XLA alias/fuse.
        return x

    if consensus_type == "avg":
        assert dim == 1, "kernel implemented for dim=1 (segment axis)"
        return _avg_consensus(x)

    # PyTorch module returns None for unknown consensus types.
    return None


if __name__ == "__main__":
    k0, k1, k2 = jax.random.split(jax.random.PRNGKey(0), 3)

    # --- 'avg' consensus, small aligned case: batch=2, segments=8, feats=32 ---
    N, T, C = 2, 8, 32
    x = jax.random.normal(k0, (N, T, C), dtype=jnp.float32)
    out_avg = jax.block_until_ready(consensus_module(x, "avg", dim=1))
    ref_avg = jnp.mean(x, axis=1, keepdims=True)
    assert out_avg.shape == (N, 1, C)
    assert jnp.allclose(out_avg, ref_avg, atol=1e-5, rtol=1e-5)

    # --- 'avg', unaligned bf16 (masked edge loads/stores, no padding pass) ---
    N2, T2, C2 = 5, 3, 200
    x2 = jax.random.normal(k1, (N2, T2, C2)).astype(jnp.bfloat16)
    out_avg2 = jax.block_until_ready(consensus_module(x2, "avg", dim=1))
    ref_avg2 = jnp.mean(x2.astype(jnp.float32), axis=1, keepdims=True)
    assert out_avg2.shape == (N2, 1, C2)
    assert jnp.allclose(out_avg2.astype(jnp.float32), ref_avg2,
                        atol=2e-2, rtol=2e-2)

    # --- 'avg', forced multi-block grid (batch + channel tiling, ragged edges)
    N3, T3, C3 = 37, 4, 272
    x3 = jax.random.normal(k2, (N3, T3, C3), dtype=jnp.float32)
    out_avg3 = jax.block_until_ready(
        _avg_consensus(x3, tile_budget_bytes=16 * 1024))
    ref_avg3 = jnp.mean(x3, axis=1, keepdims=True)
    assert out_avg3.shape == (N3, 1, C3)
    assert jnp.allclose(out_avg3, ref_avg3, atol=1e-5, rtol=1e-5)

    # --- 'identity' / 'rnn' consensus: passthrough ---
    out_id = jax.block_until_ready(consensus_module(x, "identity", dim=1))
    assert out_id.shape == (N, T, C) and jnp.allclose(out_id, x)
    out_rnn = jax.block_until_ready(consensus_module(x, "rnn", dim=1))
    assert jnp.allclose(out_rnn, x)

    # --- unknown consensus type -> None (mirrors the PyTorch module) ---
    assert consensus_module(x, "max", dim=1) is None

    print("KERNEL_OK")
</pallas_src>

<mosaic_0001>
module attributes {stable_mosaic.version = 11 : i64} {
  func.func @_avg_consensus_kernel(%arg0: i32, %arg1: i32, %arg2: memref<2x8x32xf32, #tpu.memory_space<vmem>>, %arg3: memref<2x32xf32, #tpu.memory_space<vmem>>) attributes {dimension_semantics = [#tpu.dimension_semantics<parallel>, #tpu.dimension_semantics<parallel>], iteration_bounds = array<i64: 1, 1>, scalar_prefetch = 0 : i64, scratch_operands = 0 : i64, tpu.core_type = #tpu.core_type<tc>, window_params = [{transform_indices = @transform_0, window_bounds = array<i64: 2, 8, 32>}, {transform_indices = @transform_1, window_bounds = array<i64: 2, 32>}]} {
    %c0 = arith.constant 0 : index
    %c0_0 = arith.constant 0 : index
    %c0_1 = arith.constant 0 : index
    %0 = vector.load %arg2[%c0, %c0_0, %c0_1] : memref<2x8x32xf32, #tpu.memory_space<vmem>>, vector<2x8x32xf32>
    %cst = arith.constant dense<0.000000e+00> : vector<2x32xf32>
    %1 = vector.multi_reduction <add>, %0, %cst [1] : vector<2x8x32xf32> to vector<2x32xf32>
    %cst_2 = arith.constant 1.250000e-01 : f32
    %2 = vector.broadcast %cst_2 : f32 to vector<2x32xf32>
    %3 = arith.mulf %1, %2 : vector<2x32xf32>
    %c0_3 = arith.constant 0 : index
    %c0_4 = arith.constant 0 : index
    %4 = vector.load %arg3[%c0_3, %c0_4] : memref<2x32xf32, #tpu.memory_space<vmem>>, vector<2x32xf32>
    tpu.vector_store %arg3[%c0_3, %c0_4], %3 {strides = array<i32>} : memref<2x32xf32, #tpu.memory_space<vmem>>, vector<2x32xf32>,
    return
  }
  func.func @transform_0(%arg0: i32, %arg1: i32) -> (i32, i32, i32) {
    %c0_i32 = arith.constant 0 : i32
    %c0_i32_0 = arith.constant 0 : i32
    return %arg0, %c0_i32, %arg1 : i32, i32, i32
  }
  func.func @transform_1(%arg0: i32, %arg1: i32) -> (i32, i32) {
    %c0_i32 = arith.constant 0 : i32
    return %arg0, %arg1 : i32, i32
  }
}

</mosaic_0001>

<llo_original>
// kernel: tpu_custom_call.1
$region0: #{tpu_custom_call.1}
  #allocation0 [shape = 'u32[]', space=smem, size = 0x4, offset = 0x4, fixed_abs, tag = 'smem constant byte address 0x4 - core index']
  #allocation1 [shape = 'u32[144,128]{1,0:T(1,128)}', space=vmem, size = 0x12000, scoped, tag = 'internal scratch']
  %s0 = inlined_call_operand.hbm [shape: f32[2,8,32], index: 0, kind: input, shape index: {}]
  %s1 = inlined_call_operand.hbm [shape: f32[2,32], index: 1, kind: output, shape index: {}]
  %s2 = sld [smem:[#allocation0]]
  $region18: #{tpu_custom_call.1} parent=0
    _
  %s4 = ssub.s32 1, %s2
  %s5 = scalar_select 0, %s4, %s2
  $region1: #{tpu_custom_call.1} parent=0
    #allocation2 [shape = 'u8[8192]{0}', space=vmem, size = 0x2000, scoped, tag = 'input window, operand 0, single buffered']
    #allocation3 [shape = 's32[1]{0}', space=sflag, size = 0x4, scoped, tag = 'scoped memory for tpu_custom_call.1']
    #allocation4 [shape = 's32[1]{0}', space=sflag, size = 0x4, scoped, tag = 'scoped memory for tpu_custom_call.1']
    #allocation5 [shape = 'u8[1024]{0}', space=vmem, size = 0x400, scoped, tag = 'output window, operand 0, single buffered']
    %6 = vsyncpa [#allocation3], 0
    %7 = vsyncpa [#allocation4], 0
    // Predicated region
    $region2: #{tpu_custom_call.1} parent=1 // pred_check
      _
    $region3: #{tpu_custom_call.1} parent=1 // pred_check_branch
      %9 = sbr.rel (0) target = $region5
    $region4: #{tpu_custom_call.1} parent=1 // pred_region
      %s11 = ssub.s32 256, 256
      %12 = vsyncadd [#allocation3], %s11
      %s13 = sshll.u32 [#allocation2], 4
      %s14 = int_to_ptr.vmem [resolvable:$true] %s13
      %19 = dma.hbm_to_vmem [thread:$0]  %s0, 256, %s14, [#allocation3], 128, 128, 8
    $region5: #{tpu_custom_call.1} parent=1 // pred_fallthru
      _
    // Predicated region
    $region6: #{tpu_custom_call.1} parent=1 // pred_check
      _
    $region7: #{tpu_custom_call.1} parent=1 // pred_check_branch
      %21 = sbr.rel (0) target = $region9
    $region8: #{tpu_custom_call.1} parent=1 // pred_region
      %22 = dma.done [#allocation3], 256
    $region9: #{tpu_custom_call.1} parent=1 // pred_fallthru
      _
    %v23 = vld [vmem:[#allocation2] sm:$0xff]
    %v24 = vld [vmem:[#allocation2 + $0x8] sm:$0xff]
    %vm25 = vcmask 261120
    %v26 = vsel %vm25, %v23, 0.0
    %v27 = vrot.slane %v26, 4
    %v28 = vadd.f32 %v26, %v27
    %v29 = vrot.slane %v28, 2
    %v30 = vadd.f32 %v28, %v29
    %v31 = vrot.slane %v30, 1
    %v32 = vadd.f32 %v30, %v31
    %v33 = vsel %vm25, %v24, 0.0
    %v34 = vrot.slane %v33, 4
    %v35 = vadd.f32 %v33, %v34
    %v36 = vrot.slane %v35, 2
    %v37 = vadd.f32 %v35, %v36
    %v38 = vrot.slane %v37, 1
    %v39 = vadd.f32 %v37, %v38
    %v40 = vmul.f32 %v32, 0.125
    %v41 = vmul.f32 %v39, 0.125
    %vm44 = vcmask 1041409
    %v45 = vsel %vm44, %v41, %v40
    %vm47 = vcmask 254976
    %48 = vst.msk [vmem:[#allocation5] sm:$0x3] %vm47, %v45
    // Predicated region
    $region10: #{tpu_custom_call.1} parent=1 // pred_check
      _
    $region11: #{tpu_custom_call.1} parent=1 // pred_check_branch
      %50 = sbr.rel (0) target = $region13
    $region12: #{tpu_custom_call.1} parent=1 // pred_region
      %s52 = ssub.s32 32, 32
      %53 = vsyncadd [#allocation4], %s52
      %s55 = sshll.u32 [#allocation5], 4
      %s56 = int_to_ptr.vmem [resolvable:$true] %s55
      %58 = dma.vmem_to_hbm [thread:$0]  %s56, 32, %s1, [#allocation4]
    $region13: #{tpu_custom_call.1} parent=1 // pred_fallthru
      _
    // Predicated region
    $region14: #{tpu_custom_call.1} parent=1 // pred_check
      _
    $region15: #{tpu_custom_call.1} parent=1 // pred_check_branch
      %60 = sbr.rel (0) target = $region17
    $region16: #{tpu_custom_call.1} parent=1 // pred_region
      %61 = dma.done [#allocation4], 32
    $region17: #{tpu_custom_call.1} parent=1 // pred_fallthru
      _
    %62 = vsyncpa [#allocation3], 1
    %63 = vsyncpa [#allocation4], 1

</llo_original>
